<compile_context>
chip_gen: v5e
topology: v5e:2x2
jax: 0.10.0
libtpu: 0.0.40
codegen_flags: <defaults>
</compile_context>

<pallas_src>
import functools

import jax
import jax.numpy as jnp
from jax import lax
from jax.experimental import pallas as pl
from jax.experimental.pallas import tpu as pltpu


def _round_up(x, m):
    return ((x + m - 1) // m) * m


# ---------------------------------------------------------------------------
# classification + accuracy kernel: one batch element per grid step
# ---------------------------------------------------------------------------
def _cls_kernel(logits_ref, labels_ref, out_ref):
    x = logits_ref[...].astype(jnp.float32)            # [1, Q, C]
    lab = labels_ref[0]                                 # [1, Q] (lane-oriented)
    _, Q, C = x.shape

    # accuracy: first-occurrence argmax over the class (last) axis
    max_last = jnp.max(x, axis=-1, keepdims=True)
    cls_idx = lax.broadcasted_iota(jnp.int32, (1, Q, C), 2)
    preds = jnp.min(jnp.where(x == max_last, cls_idx, C), axis=-1)   # [1, Q]
    correct = jnp.sum((preds == lab).astype(jnp.float32))

    # CrossEntropyLoss on 3-D input: class axis is dim 1 (the query axis).
    # Valid because Q == C in the original module (asserted in the wrapper).
    m = jnp.max(x, axis=1, keepdims=True)
    lse = jnp.log(jnp.sum(jnp.exp(x - m), axis=1, keepdims=True)) + m
    logp = x - lse                                                    # [1, Q, C]
    q_ids = lax.broadcasted_iota(jnp.int32, (1, Q, C), 1)
    onehot = (q_ids == lab[:, None, :]).astype(jnp.float32)          # [1, Q, C]
    nll_sum = -jnp.sum(onehot * logp)

    # lane-dense (1, 1, 128) store: lane 0 = nll sum, lane 1 = correct count
    lane = lax.broadcasted_iota(jnp.int32, (1, 1, 128), 2)
    out_ref[...] = jnp.where(lane == 0, nll_sum,
                             jnp.where(lane == 1, correct, 0.0))


# ---------------------------------------------------------------------------
# contrastive kernel: one upper-triangular (i, j) tile of the M x M pair
# matrix per grid step; tile indices arrive via scalar prefetch.
# ---------------------------------------------------------------------------
def _pair_kernel(pi_ref, pj_ref,
                 ei_ref, ej_ref, li_ref, lj_ref, sqi_ref, sqj_ref,
                 out_ref, *, margin, need_mask):
    s = pl.program_id(0)
    ti = pi_ref[s]
    tj = pj_ref[s]

    ei = ei_ref[...]                                   # [tile, D] (input dtype)
    ej = ej_ref[...]                                   # [tile, D]

    # Gram block on the MXU, contracting the last dim of both operands.
    gram = lax.dot_general(ei, ej,
                           dimension_numbers=(((1,), (1,)), ((), ())),
                           preferred_element_type=jnp.float32)        # [tile, tile]

    # squared norms are precomputed in the wrapper (row: sublane, col: lane)
    d2 = jnp.maximum(sqi_ref[...] + sqj_ref[...] - 2.0 * gram, 0.0)
    dist = jnp.sqrt(d2)

    same = li_ref[...] == lj_ref[...]                                 # [tile, tile]
    # fused pos/neg: same -> dist ; different -> relu(margin - dist)
    contrib = jnp.where(same, dist, jnp.maximum(margin - dist, 0.0))

    if need_mask:  # static: only when M was padded up to the tile size
        contrib = jnp.where((li_ref[...] >= 0) & (lj_ref[...] >= 0),
                            contrib, 0.0)

    tile_sum = jnp.sum(contrib)
    # diagonal tiles: zero diagonal + symmetric off-diagonal -> halve once here
    tile_sum = jnp.where(ti == tj, 0.5 * tile_sum, tile_sum)

    lane = lax.broadcasted_iota(jnp.int32, (1, 1, 128), 2)
    out_ref[...] = jnp.where(lane == 0, tile_sum, 0.0)


# ---------------------------------------------------------------------------
# wrapper
# ---------------------------------------------------------------------------
def loss_forward(output, embeddings, labels, *, num_supports, margin=1.0,
                 pair_tile=512):
    """Returns (cls_loss, contrastive_loss, accuracy) as f32 scalars."""
    B, N, C = output.shape
    S = num_supports
    Q = N - S
    assert Q == C, "original CrossEntropyLoss usage requires num_queries == num_classes"
    D = embeddings.shape[-1]
    M = B * N

    labels_i32 = labels.astype(jnp.int32)

    # ---------------- classification + accuracy (per-batch grid) ----------------
    logits_q = output[:, S:, :]                      # [B, Q, C]  (host/XLA slice)
    labels_q = labels_i32[:, S:].reshape(B, 1, Q)    # lane-oriented labels

    cls_out = pl.pallas_call(
        _cls_kernel,
        out_shape=jax.ShapeDtypeStruct((B, 1, 128), jnp.float32),
        grid=(B,),
        in_specs=[pl.BlockSpec((1, Q, C), lambda b: (b, 0, 0)),
                  pl.BlockSpec((1, 1, Q), lambda b: (b, 0, 0))],
        out_specs=pl.BlockSpec((1, 1, 128), lambda b: (b, 0, 0)),
        compiler_params=pltpu.CompilerParams(
            dimension_semantics=("parallel",)),
    )(logits_q, labels_q)
    # CE default reduction='mean' over the B*C positions; accuracy over B*Q preds.
    cls_loss = jnp.sum(cls_out[:, 0, 0]) / (B * C)
    accuracy = jnp.sum(cls_out[:, 0, 1]) / (B * Q)

    # ---------------- contrastive (upper-triangular tiled pair matrix) ----------
    emb_flat = embeddings.reshape(M, D)
    lab_flat = labels_i32.reshape(M)
    sq_flat = jnp.sum(emb_flat.astype(jnp.float32) ** 2, axis=-1)     # [M]

    tile = pair_tile if M >= pair_tile else _round_up(M, 8)
    m_pad = _round_up(M, tile)
    if m_pad != M:
        emb_flat = jnp.pad(emb_flat, ((0, m_pad - M), (0, 0)))
        lab_flat = jnp.pad(lab_flat, (0, m_pad - M), constant_values=-1)
        sq_flat = jnp.pad(sq_flat, (0, m_pad - M))

    lab_col = lab_flat.reshape(m_pad, 1)   # sublane-oriented labels
    lab_row = lab_flat.reshape(1, m_pad)   # lane-oriented labels
    sq_col = sq_flat.reshape(m_pad, 1)     # sublane-oriented |e|^2
    sq_row = sq_flat.reshape(1, m_pad)     # lane-oriented |e|^2

    n_tiles = m_pad // tile
    # upper-triangular tile schedule (j >= i), scalar-prefetched into SMEM
    ti_list, tj_list = [], []
    for i in range(n_tiles):
        for j in range(i, n_tiles):
            ti_list.append(i)
            tj_list.append(j)
    n_steps = len(ti_list)
    ti_idx = jnp.asarray(ti_list, jnp.int32)
    tj_idx = jnp.asarray(tj_list, jnp.int32)

    pair_kernel = functools.partial(_pair_kernel, margin=float(margin),
                                    need_mask=(m_pad != M))
    partials = pl.pallas_call(
        pair_kernel,
        out_shape=jax.ShapeDtypeStruct((n_steps, 1, 128), jnp.float32),
        grid_spec=pltpu.PrefetchScalarGridSpec(
            num_scalar_prefetch=2,
            grid=(n_steps,),
            in_specs=[
                pl.BlockSpec((tile, D), lambda s, pi, pj: (pi[s], 0)),  # row emb
                pl.BlockSpec((tile, D), lambda s, pi, pj: (pj[s], 0)),  # col emb
                pl.BlockSpec((tile, 1), lambda s, pi, pj: (pi[s], 0)),  # row labels
                pl.BlockSpec((1, tile), lambda s, pi, pj: (0, pj[s])),  # col labels
                pl.BlockSpec((tile, 1), lambda s, pi, pj: (pi[s], 0)),  # row |e|^2
                pl.BlockSpec((1, tile), lambda s, pi, pj: (0, pj[s])),  # col |e|^2
            ],
            out_specs=pl.BlockSpec((1, 1, 128), lambda s, pi, pj: (s, 0, 0)),
        ),
        compiler_params=pltpu.CompilerParams(
            dimension_semantics=("parallel",),
            vmem_limit_bytes=48 * 1024 * 1024),
    )(ti_idx, tj_idx, emb_flat, emb_flat, lab_col, lab_row, sq_col, sq_row)

    n_pairs = M * (M - 1) // 2
    # guard M == 1 (PyTorch would produce NaN from mean of empty pdist)
    contrastive = jnp.sum(partials[:, 0, 0]) / max(n_pairs, 1)

    return cls_loss, contrastive, accuracy


if __name__ == "__main__":
    # small shapes consistent with the module's forward
    B, N, S, D = 2, 8, 4, 32
    Q = N - S
    C = Q  # required by the original CrossEntropyLoss(output_3d, labels_2d) call

    key = jax.random.PRNGKey(0)
    k1, k2, k3 = jax.random.split(key, 3)
    output = jax.random.normal(k1, (B, N, C), dtype=jnp.float32)
    embeddings = jax.random.normal(k2, (B, N, D), dtype=jnp.float32)
    labels = jax.random.randint(k3, (B, N), 0, C, dtype=jnp.int32)

    cls_loss, con_loss, acc = loss_forward(output, embeddings, labels,
                                           num_supports=S, margin=1.0)
    jax.block_until_ready((cls_loss, con_loss, acc))
    print("KERNEL_OK")
</pallas_src>

<mosaic_0001>
module attributes {stable_mosaic.version = 11 : i64} {
  func.func @_cls_kernel(%arg0: i32, %arg1: memref<1x4x4xf32, #tpu.memory_space<vmem>>, %arg2: memref<1x1x4xi32, #tpu.memory_space<vmem>>, %arg3: memref<1x1x128xf32, #tpu.memory_space<vmem>>) attributes {dimension_semantics = [#tpu.dimension_semantics<parallel>], iteration_bounds = array<i64: 2>, scalar_prefetch = 0 : i64, scratch_operands = 0 : i64, tpu.core_type = #tpu.core_type<tc>, window_params = [{transform_indices = @transform_0, window_bounds = array<i64: 1, 4, 4>}, {transform_indices = @transform_1, window_bounds = array<i64: 1, 1, 4>}, {transform_indices = @transform_2, window_bounds = array<i64: 1, 1, 128>}]} {
    %c0 = arith.constant 0 : index
    %c0_0 = arith.constant 0 : index
    %c0_1 = arith.constant 0 : index
    %0 = vector.load %arg1[%c0, %c0_0, %c0_1] : memref<1x4x4xf32, #tpu.memory_space<vmem>>, vector<1x4x4xf32>
    %c0_2 = arith.constant 0 : index
    %c0_3 = arith.constant 0 : index
    %c0_4 = arith.constant 0 : index
    %1 = vector.load %arg2[%c0_2, %c0_3, %c0_4] : memref<1x1x4xi32, #tpu.memory_space<vmem>>, vector<1x1x4xi32>
    %2 = vector.shape_cast %1 : vector<1x1x4xi32> to vector<1x4xi32>
    %cst = arith.constant dense<0xFF800000> : vector<1x4xf32>
    %3 = vector.multi_reduction <maximumf>, %0, %cst [2] : vector<1x4x4xf32> to vector<1x4xf32>
    %4 = vector.shape_cast %3 : vector<1x4xf32> to vector<1x4x1xf32>
    %5 = tpu.iota {dimensions = array<i32: 2>} : vector<1x4x4xi32>
    %6 = vector.broadcast %4 : vector<1x4x1xf32> to vector<1x4x4xf32>
    %7 = arith.cmpf oeq, %0, %6 : vector<1x4x4xf32>
    %c4_i32 = arith.constant 4 : i32
    %8 = vector.broadcast %c4_i32 : i32 to vector<1x4x4xi32>
    %9 = arith.select %7, %5, %8 : vector<1x4x4xi1>, vector<1x4x4xi32>
    %cst_5 = arith.constant dense<2147483647> : vector<1x4xi32>
    %10 = vector.multi_reduction <minsi>, %9, %cst_5 [2] : vector<1x4x4xi32> to vector<1x4xi32>
    %11 = arith.cmpi eq, %10, %2 : vector<1x4xi32>
    %12 = arith.extui %11 : vector<1x4xi1> to vector<1x4xi32>
    %13 = arith.sitofp %12 : vector<1x4xi32> to vector<1x4xf32>
    %14 = vector.shape_cast %13 : vector<1x4xf32> to vector<1x1x4xf32>
    %cst_6 = arith.constant dense<0.000000e+00> : vector<1xf32>
    %15 = vector.multi_reduction <add>, %14, %cst_6 [1, 2] : vector<1x1x4xf32> to vector<1xf32>
    %16 = vector.shape_cast %15 : vector<1xf32> to vector<1x1x1xf32>
    %17 = vector.extract %16[0, 0, 0] : f32 from vector<1x1x1xf32>
    %cst_7 = arith.constant dense<0xFF800000> : vector<1x4xf32>
    %18 = vector.multi_reduction <maximumf>, %0, %cst_7 [1] : vector<1x4x4xf32> to vector<1x4xf32>
    %19 = vector.shape_cast %18 : vector<1x4xf32> to vector<1x1x4xf32>
    %20 = vector.broadcast %19 : vector<1x1x4xf32> to vector<1x4x4xf32>
    %21 = arith.subf %0, %20 : vector<1x4x4xf32>
    %22 = math.exp %21 : vector<1x4x4xf32>
    %cst_8 = arith.constant dense<0.000000e+00> : vector<1x4xf32>
    %23 = vector.multi_reduction <add>, %22, %cst_8 [1] : vector<1x4x4xf32> to vector<1x4xf32>
    %24 = vector.shape_cast %23 : vector<1x4xf32> to vector<1x1x4xf32>
    %25 = math.log %24 : vector<1x1x4xf32>
    %26 = arith.addf %25, %19 : vector<1x1x4xf32>
    %27 = vector.broadcast %26 : vector<1x1x4xf32> to vector<1x4x4xf32>
    %28 = arith.subf %0, %27 : vector<1x4x4xf32>
    %29 = tpu.iota {dimensions = array<i32: 1>} : vector<1x4x4xi32>
    %30 = vector.shape_cast %2 : vector<1x4xi32> to vector<1x1x4xi32>
    %31 = vector.broadcast %30 : vector<1x1x4xi32> to vector<1x4x4xi32>
    %32 = arith.cmpi eq, %29, %31 : vector<1x4x4xi32>
    %33 = arith.extui %32 : vector<1x4x4xi1> to vector<1x4x4xi32>
    %34 = arith.sitofp %33 : vector<1x4x4xi32> to vector<1x4x4xf32>
    %35 = arith.mulf %34, %28 : vector<1x4x4xf32>
    %36 = vector.shape_cast %35 : vector<1x4x4xf32> to vector<1x1x4x4xf32>
    %cst_9 = arith.constant dense<0.000000e+00> : vector<1xf32>
    %37 = vector.multi_reduction <add>, %36, %cst_9 [1, 2, 3] : vector<1x1x4x4xf32> to vector<1xf32>
    %38 = vector.shape_cast %37 : vector<1xf32> to vector<1x1x1x1xf32>
    %39 = vector.extract %38[0, 0, 0, 0] : f32 from vector<1x1x1x1xf32>
    %cst_10 = arith.constant 0.000000e+00 : f32
    %40 = arith.subf %cst_10, %39 : f32
    %41 = tpu.iota {dimensions = array<i32: 2>} : vector<1x1x128xi32>
    %c0_i32 = arith.constant 0 : i32
    %42 = vector.broadcast %c0_i32 : i32 to vector<1x1x128xi32>
    %43 = arith.cmpi eq, %41, %42 : vector<1x1x128xi32>
    %c1_i32 = arith.constant 1 : i32
    %44 = vector.broadcast %c1_i32 : i32 to vector<1x1x128xi32>
    %45 = arith.cmpi eq, %41, %44 : vector<1x1x128xi32>
    %cst_11 = arith.constant 0.000000e+00 : f32
    %46 = vector.broadcast %17 : f32 to vector<1x1x128xf32>
    %47 = vector.broadcast %cst_11 : f32 to vector<1x1x128xf32>
    %48 = arith.select %45, %46, %47 : vector<1x1x128xi1>, vector<1x1x128xf32>
    %49 = vector.broadcast %40 : f32 to vector<1x1x128xf32>
    %50 = arith.select %43, %49, %48 : vector<1x1x128xi1>, vector<1x1x128xf32>
    %c0_12 = arith.constant 0 : index
    %c0_13 = arith.constant 0 : index
    %c0_14 = arith.constant 0 : index
    %51 = vector.load %arg3[%c0_12, %c0_13, %c0_14] : memref<1x1x128xf32, #tpu.memory_space<vmem>>, vector<1x1x128xf32>
    tpu.vector_store %arg3[%c0_12, %c0_13, %c0_14], %50 {strides = array<i32>} : memref<1x1x128xf32, #tpu.memory_space<vmem>>, vector<1x1x128xf32>,
    return
  }
  func.func @transform_0(%arg0: i32) -> (i32, i32, i32) {
    %c0_i32 = arith.constant 0 : i32
    %c0_i32_0 = arith.constant 0 : i32
    %c0_i32_1 = arith.constant 0 : i32
    return %arg0, %c0_i32, %c0_i32_0 : i32, i32, i32
  }
  func.func @transform_1(%arg0: i32) -> (i32, i32, i32) {
    %c0_i32 = arith.constant 0 : i32
    %c0_i32_0 = arith.constant 0 : i32
    %c0_i32_1 = arith.constant 0 : i32
    return %arg0, %c0_i32, %c0_i32_0 : i32, i32, i32
  }
  func.func @transform_2(%arg0: i32) -> (i32, i32, i32) {
    %c0_i32 = arith.constant 0 : i32
    %c0_i32_0 = arith.constant 0 : i32
    %c0_i32_1 = arith.constant 0 : i32
    return %arg0, %c0_i32, %c0_i32_0 : i32, i32, i32
  }
}

</mosaic_0001>

<llo_original>
// kernel: tpu_custom_call.1
$region0: #{tpu_custom_call.1}
  #allocation0 [shape = 'u32[]', space=smem, size = 0x4, offset = 0x4, fixed_abs, tag = 'smem constant byte address 0x4 - core index']
  #allocation1 [shape = 'u32[72,128]{1,0:T(1,128)}', space=vmem, size = 0x9000, scoped, tag = 'internal scratch']
  %s0 = inlined_call_operand.hbm [shape: f32[2,4,4], index: 0, kind: input, shape index: {}]
  %s1 = inlined_call_operand.hbm [shape: s32[2,1,4], index: 1, kind: input, shape index: {}]
  %s2 = inlined_call_operand.hbm [shape: f32[2,1,128], index: 2, kind: output, shape index: {}]
  %s3 = sld [smem:[#allocation0]]
  $region49: #{tpu_custom_call.1} parent=0
    _
  %s5 = ssub.s32 1, %s3
  %s6 = scalar_select 0, %s5, %s3
  $region1: #{tpu_custom_call.1} parent=0
    #allocation2 [shape = 'u8[4096]{0}', space=vmem, size = 0x1000, scoped, tag = 'input window, operand 0']
    #allocation3 [shape = 's32[2]{0}', space=sflag, size = 0x8, scoped, tag = 'scoped memory for tpu_custom_call.1']
    #allocation4 [shape = 's32[2]{0}', space=sflag, size = 0x8, scoped, tag = 'scoped memory for tpu_custom_call.1']
    #allocation5 [shape = 'u8[1024]{0}', space=vmem, size = 0x400, scoped, tag = 'input window, operand 1']
    #allocation6 [shape = 's32[2]{0}', space=sflag, size = 0x8, scoped, tag = 'scoped memory for tpu_custom_call.1']
    #allocation7 [shape = 'u8[1024]{0}', space=vmem, size = 0x400, scoped, tag = 'output window, operand 0']
    %7 = vsyncpa [#allocation3], 0
    %s8 = scalar_lea.sflag [#allocation3], 1
    %9 = vsyncpa %s8, 0
    %10 = vsyncpa [#allocation6], 0
    %s11 = scalar_lea.sflag [#allocation6], 1
    %12 = vsyncpa %s11, 0
    %13 = vsyncpa [#allocation4], 0
    %s14 = scalar_lea.sflag [#allocation4], 1
    %15 = vsyncpa %s14, 0
    loop: start=0, step=1, limit=4
    $region2: #{tpu_custom_call.1} parent=1 // loop_pre_header
      _
    $region3: #{tpu_custom_call.1} parent=1 // loop_header
      %s17 = sphi 0, %s21
      %p18 = scmp.ge.s32.totalorder %s17, 4
      %s27 = sphi 0, %s29
      %s30 = sphi 0, %s27
      %s31 = sphi 0, %s30
      %s47 = sphi 0, %s31
      %s53 = sphi 0, %s55
      %s56 = sphi 0, %s53
      %s57 = sphi 0, %s56
      %s73 = sphi 0, %s57
      %s79 = sphi 0, %s81
      %s82 = sphi 0, %s79
      %s83 = sphi 0, %s82
      %s99 = sphi 0, %s83
    $region4: #{tpu_custom_call.1} parent=1 // loop_header_branch
      %20 = sbr.rel (%p18) target = $region8
    $region5: #{tpu_custom_call.1} parent=1 // loop_body
      %s22 = ssub.s32 %s17, 1
      %s23 = ssub.s32 %s17, 2
      %s24 = sadd.s32 %s17, 1
      %s25 = ssub.s32 %s17, %s24
      %p26 = scmp.eq.s32.totalorder %s25, 0
      %s28 = sadd.s32 %s27, 1
      %s29 = scalar_select %p26, %s27, %s28
      %p32 = pneg %p26
      %p33 = scmp.eq.s32.totalorder %s17, 1
      %p34 = por %p32, %p33
      %p35 = scmp.ne.s32.totalorder %s27, %s30
      %p36 = scmp.eq.s32.totalorder %s17, 0
      %p37 = por %p35, %p36
      %p38 = scmp.ne.s32.totalorder %s27, %s30
      %p39 = scmp.eq.s32.totalorder %s22, 1
      %p40 = por %p38, %p39
      %p41 = scmp.ne.s32.totalorder %s30, %s31
      %p42 = scmp.eq.s32.totalorder %s22, 0
      %p43 = por %p41, %p42
      %p44 = scmp.ne.s32.totalorder %s30, %s31
      %p45 = scmp.eq.s32.totalorder %s23, 1
      %p46 = por %p44, %p45
      %p48 = scmp.ne.s32.totalorder %s31, %s47
      %p49 = scmp.eq.s32.totalorder %s23, 0
      %p50 = por %p48, %p49
      %s51 = ssub.s32 %s17, %s24
      %p52 = scmp.eq.s32.totalorder %s51, 0
      %s54 = sadd.s32 %s53, 1
      %s55 = scalar_select %p52, %s53, %s54
      %p58 = pneg %p52
      %p59 = scmp.eq.s32.totalorder %s17, 1
      %p60 = por %p58, %p59
      %p61 = scmp.ne.s32.totalorder %s53, %s56
      %p62 = scmp.eq.s32.totalorder %s17, 0
      %p63 = por %p61, %p62
      %p64 = scmp.ne.s32.totalorder %s53, %s56
      %p65 = scmp.eq.s32.totalorder %s22, 1
      %p66 = por %p64, %p65
      %p67 = scmp.ne.s32.totalorder %s56, %s57
      %p68 = scmp.eq.s32.totalorder %s22, 0
      %p69 = por %p67, %p68
      %p70 = scmp.ne.s32.totalorder %s56, %s57
      %p71 = scmp.eq.s32.totalorder %s23, 1
      %p72 = por %p70, %p71
      %p74 = scmp.ne.s32.totalorder %s57, %s73
      %p75 = scmp.eq.s32.totalorder %s23, 0
      %p76 = por %p74, %p75
      %s77 = ssub.s32 %s17, %s24
      %p78 = scmp.eq.s32.totalorder %s77, 0
      %s80 = sadd.s32 %s79, 1
      %s81 = scalar_select %p78, %s79, %s80
      %p84 = pneg %p78
      %p85 = scmp.eq.s32.totalorder %s17, 1
      %p86 = por %p84, %p85
      %p87 = scmp.ne.s32.totalorder %s79, %s82
      %p88 = scmp.eq.s32.totalorder %s17, 0
      %p89 = por %p87, %p88
      %p90 = scmp.ne.s32.totalorder %s79, %s82
      %p91 = scmp.eq.s32.totalorder %s22, 1
      %p92 = por %p90, %p91
      %p93 = scmp.ne.s32.totalorder %s82, %s83
      %p94 = scmp.eq.s32.totalorder %s22, 0
      %p95 = por %p93, %p94
      %p96 = scmp.ne.s32.totalorder %s82, %s83
      %p97 = scmp.eq.s32.totalorder %s23, 1
      %p98 = por %p96, %p97
      %p100 = scmp.ne.s32.totalorder %s83, %s99
      %p101 = scmp.eq.s32.totalorder %s23, 0
      %p102 = por %p100, %p101
      %p103 = scmp.le.s32.totalorder 1, %s17
      %p104 = scmp.lt.s32.totalorder %s17, 3
      %p105 = pnand %p103, %p104
      %p106 = pneg %p105
      // Predicated region
      $region9: #{tpu_custom_call.1} parent=5 // pred_check
        _
      $region10: #{tpu_custom_call.1} parent=5 // pred_check_branch
        %108 = sbr.rel (%p105) target = $region12
      $region11: #{tpu_custom_call.1} parent=5 // pred_region
        %s109 = ssub.s32 %s17, 1
      $region12: #{tpu_custom_call.1} parent=5 // pred_fallthru
        _
      %p110 = scmp.lt.s32.totalorder %s17, 2
      // Predicated region
      $region13: #{tpu_custom_call.1} parent=5 // pred_check
        %p111 = pneg %p110
      $region14: #{tpu_custom_call.1} parent=5 // pred_check_branch
        %113 = sbr.rel (%p111) target = $region16
      $region15: #{tpu_custom_call.1} parent=5 // pred_region
        // Predicated region
        $region17: #{tpu_custom_call.1} parent=15 // pred_check
          %p114 = pneg %p37
        $region18: #{tpu_custom_call.1} parent=15 // pred_check_branch
          %116 = sbr.rel (%p114) target = $region20
        $region19: #{tpu_custom_call.1} parent=15 // pred_region
          %s117 = sand.u32 %s27, 1
          %s118 = scalar_lea.sflag [#allocation3], %s117
          %s119 = sand.u32 %s27, 1
          %s120 = smul.addr %s119, 4
          %s121 = scalar_lea.vmem [#allocation2], %s120
          %123 = vsyncadd %s118, 0
          %s124 = smul.addr %s17, 4
          %s125 = scalar_lea.hbm %s0, %s124
          %s127 = sshll.u32 %s125, 4
          %s128 = int_to_ptr.hbm [resolvable:$true] %s127
          %s129 = sshll.u32 %s121, 4
          %s130 = int_to_ptr.vmem [resolvable:$true] %s129
          %132 = dma.hbm_to_vmem [thread:$0]  %s128, 64, %s130, %s118
        $region20: #{tpu_custom_call.1} parent=15 // pred_fallthru
          _
        // Predicated region
        $region21: #{tpu_custom_call.1} parent=15 // pred_check
          %p133 = pneg %p63
        $region22: #{tpu_custom_call.1} parent=15 // pred_check_branch
          %135 = sbr.rel (%p133) target = $region24
        $region23: #{tpu_custom_call.1} parent=15 // pred_region
          %s136 = sand.u32 %s53, 1
          %s137 = scalar_lea.sflag [#allocation6], %s136
          %s138 = sand.u32 %s53, 1
          %s139 = scalar_lea.vmem [#allocation5], %s138
          %141 = vsyncadd %s137, 0
          %s142 = scalar_lea.hbm %s1, %s17
          %s144 = sshll.u32 %s142, 4
          %s145 = int_to_ptr.hbm [resolvable:$true] %s144
          %s146 = sshll.u32 %s139, 4
          %s147 = int_to_ptr.vmem [resolvable:$true] %s146
          %149 = dma.hbm_to_vmem [thread:$0]  %s145, 16, %s147, %s137
        $region24: #{tpu_custom_call.1} parent=15 // pred_fallthru
          _
      $region16: #{tpu_custom_call.1} parent=5 // pred_fallthru
        _
      %p150 = scmp.le.s32.totalorder 1, %s17
      %p151 = scmp.lt.s32.totalorder %s17, 3
      %p152 = pnand %p150, %p151
      %p153 = pneg %p152
      // Predicated region
      $region25: #{tpu_custom_call.1} parent=5 // pred_check
        _
      $region26: #{tpu_custom_call.1} parent=5 // pred_check_branch
        %155 = sbr.rel (%p152) target = $region28
      $region27: #{tpu_custom_call.1} parent=5 // pred_region
        %s156 = ssub.s32 %s17, 1
        %s157 = sand.u32 %s30, 1
        %s158 = scalar_lea.sflag [#allocation3], %s157
        %s159 = sand.u32 %s30, 1
        %s160 = smul.addr %s159, 4
        %s161 = scalar_lea.vmem [#allocation2], %s160
        // Predicated region
        $region29: #{tpu_custom_call.1} parent=27 // pred_check
          %p162 = pneg %p43
        $region30: #{tpu_custom_call.1} parent=27 // pred_check_branch
          %164 = sbr.rel (%p162) target = $region32
        $region31: #{tpu_custom_call.1} parent=27 // pred_region
          %166 = dma.done %s158, 64
        $region32: #{tpu_custom_call.1} parent=27 // pred_fallthru
          _
        %s167 = sand.u32 %s56, 1
        %s168 = scalar_lea.sflag [#allocation6], %s167
        %s169 = sand.u32 %s56, 1
        %s170 = scalar_lea.vmem [#allocation5], %s169
        // Predicated region
        $region33: #{tpu_custom_call.1} parent=27 // pred_check
          %p171 = pneg %p69
        $region34: #{tpu_custom_call.1} parent=27 // pred_check_branch
          %173 = sbr.rel (%p171) target = $region36
        $region35: #{tpu_custom_call.1} parent=27 // pred_region
          %175 = dma.done %s168, 16
        $region36: #{tpu_custom_call.1} parent=27 // pred_fallthru
          _
        %s176 = sand.u32 %s30, 1
        %s177 = scalar_lea.sflag [#allocation3], %s176
        %s178 = sand.u32 %s30, 1
        %s179 = smul.addr %s178, 4
        %s180 = scalar_lea.vmem [#allocation2], %s179
        %p181 = pneg %p43
        %p182 = pneg %p40
        %s183 = sand.u32 %s56, 1
        %s184 = scalar_lea.sflag [#allocation6], %s183
        %s185 = sand.u32 %s56, 1
        %s186 = scalar_lea.vmem [#allocation5], %s185
        %p187 = pneg %p69
        %p188 = pneg %p66
        %p189 = pneg %p95
        %p190 = pneg %p92
        %s191 = sand.u32 %s82, 1
        %s192 = scalar_lea.sflag [#allocation4], %s191
        %s193 = sand.u32 %s82, 1
        %s194 = scalar_lea.vmem [#allocation7], %s193
        %v195 = vld [vmem:[%s161] sm:$0xf]
        %v196 = vld [vmem:[%s170] sm:$0x1]
        %vm197 = vcmask 27648
        %v198 = vsel %vm197, %v195, -inf
        %199 = vmax.xlane.f32.xlu0 %v198
        %v200 = vpop.xlane.xlu0 %199
        %v201 = vlaneseq
        %v202 = vand.u32 %v201, 127
        %vm203 = vcmp.eq.f32.partialorder %v195, %v200
        %v204 = vsel %vm203, %v202, 4
        %v205 = vsel %vm197, %v204, 2147483647
        %v206 = vand.u32 %v205, 65535
        %v207 = vshra.s32 %v205, 16
        %v208 = vcvt.s32.f32 %v206
        %v209 = vcvt.s32.f32 %v207
        %210 = vmin.xlane.f32.xlu0 %v209
        %v211 = vpop.xlane.xlu0 %210
        %vm212 = vcmp.eq.f32.partialorder %v209, %v211
        %v213 = vsel %vm212, %v208, inf
        %214 = vmin.xlane.f32.xlu0 %v213
        %v215 = vpop.xlane.xlu0 %214
        %v216 = vcvt.f32.s32 %v215
        %v217 = vcvt.f32.s32 %v211
        %v218 = vshll.u32 %v217, 16
        %v219 = vadd.s32 %v218, %v216
        %v220 = vperm.slane %v196, 0
        %v221 = vlaneseq
        %v222 = vshrl.u32 %v221, 7
        %224 = vset.pattern.permute.xlu0 %v222
        %225 = vperm.xlu0 %224, %v220
        %v226 = vpop.permute.xlu0 %225
        %vm227 = vcmp.eq.s32.totalorder %v219, %v226
        %v228 = vsel %vm227, 1, 0
        %v229 = vcvt.s32.f32 %v228
        %231 = vset.pattern.permute.xlu0 0
        %232 = vperm.xlu0 %231, %v229
        %v233 = vpop.permute.xlu0 %232
        %v234 = vperm.slane %v233, %v202
        %vm236 = vcmask 24576
        %v237 = vsel %vm236, %v234, 0.0
        %238 = vadd.xlane.f32.xlu0 %v237
        %v239 = vpop.xlane.xlu0 %238
        %v240 = vrot.slane %v239, 4
        %v241 = vadd.f32 %v239, %v240
        %v242 = vrot.slane %v241, 2
        %v243 = vadd.f32 %v241, %v242
        %v244 = vrot.slane %v243, 1
        %v245 = vadd.f32 %v243, %v244
        %s246 = vtos %v245
        %v247 = vrot.slane %v198, 4
        %v248 = vmax.f32 %v198, %v247
        %v249 = vrot.slane %v248, 2
        %v250 = vmax.f32 %v248, %v249
        %v251 = vrot.slane %v250, 1
        %v252 = vmax.f32 %v250, %v251
        %v253 = vsub.f32 %v195, %v252
        %v254 = vmul.f32 %v253, 1.442695
        %v255 = vpow.pop %v254
        %v256 = vsel %vm197, %v255, 0.0
        %v257 = vrot.slane %v256, 4
        %v258 = vadd.f32 %v256, %v257
        %v259 = vrot.slane %v258, 2
        %v260 = vadd.f32 %v258, %v259
        %v261 = vrot.slane %v260, 1
        %v262 = vadd.f32 %v260, %v261
        %v263 = vlog2.pop %v262
        %v264 = vmul.f32 %v263, 0.6931472
        %v265 = vadd.f32 %v264, %v252
        %v266 = vsub.f32 %v195, %v265
        %v267 = vlaneseq
        %v268 = vshrl.u32 %v267, 7
        %vm269 = vcmp.eq.s32.totalorder %v268, %v220
        %v270 = vsel %vm269, 1, 0
        %v271 = vcvt.s32.f32 %v270
        %v272 = vmul.f32 %v271, %v266
        %v273 = vsel %vm197, %v272, 0.0
        %274 = vadd.xlane.f32.xlu0 %v273
        %v275 = vpop.xlane.xlu0 %274
        %v276 = vrot.slane %v275, 4
        %v277 = vadd.f32 %v275, %v276
        %v278 = vrot.slane %v277, 2
        %v279 = vadd.f32 %v277, %v278
        %v280 = vrot.slane %v279, 1
        %v281 = vadd.f32 %v279, %v280
        %s282 = vtos %v281
        %s283 = ssub.f32 0.0, %s282
        %vm284 = vcmp.eq.s32.totalorder %v202, 0
        %vm285 = vcmp.eq.s32.totalorder %v202, 1
        %v286 = vstv %s246
        %v287 = vsel %vm285, %v286, 0.0
        %v288 = vstv %s283
        %v289 = vsel %vm284, %v288, %v287
        %290 = vst [vmem:[%s194] sm:$0x1] %v289
        %s291 = sand.u32 %s82, 1
        %s292 = scalar_lea.sflag [#allocation4], %s291
        %s293 = sand.u32 %s82, 1
        %s294 = scalar_lea.vmem [#allocation7], %s293
        // Predicated region
        $region37: #{tpu_custom_call.1} parent=27 // pred_check
          %p295 = pneg %p92
        $region38: #{tpu_custom_call.1} parent=27 // pred_check_branch
          %297 = sbr.rel (%p295) target = $region40
        $region39: #{tpu_custom_call.1} parent=27 // pred_region
          %299 = vsyncadd %s292, 0
          %s300 = scalar_lea.hbm %s2, %s22
          %s302 = sshll.u32 %s294, 4
          %s303 = int_to_ptr.vmem [resolvable:$true] %s302
          %s304 = sshll.u32 %s300, 4
          %s305 = int_to_ptr.hbm [resolvable:$true] %s304
          %307 = dma.vmem_to_hbm [thread:$0]  %s303, 16, %s305, %s292
        $region40: #{tpu_custom_call.1} parent=27 // pred_fallthru
          _
      $region28: #{tpu_custom_call.1} parent=5 // pred_fallthru
        _
      %p308 = scmp.le.s32.totalorder 2, %s17
      // Predicated region
      $region41: #{tpu_custom_call.1} parent=5 // pred_check
        %p309 = pneg %p308
      $region42: #{tpu_custom_call.1} parent=5 // pred_check_branch
        %311 = sbr.rel (%p309) target = $region44
      $region43: #{tpu_custom_call.1} parent=5 // pred_region
        %s312 = ssub.s32 %s17, 2
        // Predicated region
        $region45: #{tpu_custom_call.1} parent=43 // pred_check
          %p313 = pneg %p98
        $region46: #{tpu_custom_call.1} parent=43 // pred_check_branch
          %315 = sbr.rel (%p313) target = $region48
        $region47: #{tpu_custom_call.1} parent=43 // pred_region
          %s316 = sand.u32 %s83, 1
          %s317 = scalar_lea.sflag [#allocation4], %s316
          %s318 = sand.u32 %s83, 1
          %s319 = scalar_lea.vmem [#allocation7], %s318
          %321 = dma.done %s317, 16
        $region48: #{tpu_custom_call.1} parent=43 // pred_fallthru
          _
      $region44: #{tpu_custom_call.1} parent=5 // pred_fallthru
        _
    $region6: #{tpu_custom_call.1} parent=1 // loop_footer
      %s21 = sadd.s32 1, %s17
    $region7: #{tpu_custom_call.1} parent=1 // loop_footer_branch
      %16 = sbr.rel target = $region3
    $region8: #{tpu_custom_call.1} parent=1 // loop_exit
      _
    %322 = vsyncpa [#allocation3], 1
    %s323 = scalar_lea.sflag [#allocation3], 1
    %324 = vsyncpa %s323, 1
    %325 = vsyncpa [#allocation6], 1
    %s326 = scalar_lea.sflag [#allocation6], 1
    %327 = vsyncpa %s326, 1
    %328 = vsyncpa [#allocation4], 1
    %s329 = scalar_lea.sflag [#allocation4], 1
    %330 = vsyncpa %s329, 1

</llo_original>
